<compile_context>
chip_gen: v5e
topology: v5e:2x2
jax: 0.10.0
libtpu: 0.0.40
codegen_flags: <defaults>
</compile_context>

<pallas_src>
import functools

import jax
import jax.numpy as jnp
from jax.experimental import pallas as pl
from jax.experimental.pallas import tpu as pltpu


def _round_up(x: int, m: int) -> int:
    return ((x + m - 1) // m) * m


def _expert_kernel(x_ref, wgu_ref, wd_ref, o_ref, *, d_ff: int):
    """One token-tile of the SwiGLU expert MLP.

    x_ref  : (tm, H)        current token tile
    wgu_ref: (H, 2*d_ff)    [gate_proj | up_proj] fused weight, MXU [K, N] layout
    wd_ref : (d_ff, H)      down_proj weight,              MXU [K, N] layout
    o_ref  : (tm, H)        output tile
    """
    x = x_ref[...]

    # Fused gate+up projection: one MXU contraction -> (tm, 2*d_ff) in f32.
    gu = jnp.dot(x, wgu_ref[...], preferred_element_type=jnp.float32)

    gate = gu[:, :d_ff]
    up = gu[:, d_ff:]
    # SiLU(gate) * up, in f32 (sigmoid goes to the EUP slot).
    h = (gate * jax.nn.sigmoid(gate)) * up

    # down_proj: (tm, d_ff) @ (d_ff, H) -> (tm, H).
    out = jnp.dot(h.astype(x.dtype), wd_ref[...],
                  preferred_element_type=jnp.float32)

    o_ref[...] = out.astype(o_ref.dtype)


def prepare_expert_weights(w_gate, w_up, w_down):
    """Call ONCE at model-init time (not per forward).

    Takes the PyTorch (out_features, in_features) weights, fuses gate+up along
    the output axis and transposes both matrices into the MXU-native
    [contracting, output] layout so the kernel does plain jnp.dot matmuls.
    """
    d_ff, h = w_gate.shape
    assert w_up.shape == (d_ff, h)
    assert w_down.shape == (h, d_ff)
    w_gu = jnp.concatenate([w_gate, w_up], axis=0).T  # (H, 2*d_ff)
    w_d = w_down.T                                    # (d_ff, H)
    return w_gu, w_d


@functools.partial(jax.jit, static_argnames=("tm",))
def expert_forward(x, w_gu, w_down, *, tm: int = 256):
    """x: [batch, seq, hidden]; w_gu: (H, 2*d_ff); w_down: (d_ff, H)."""
    B, S, H = x.shape
    H2, two_dff = w_gu.shape
    assert H2 == H and two_dff % 2 == 0
    d_ff = two_dff // 2
    assert w_down.shape == (d_ff, H)

    tokens = B * S
    # Large tile for MXU occupancy, but never larger than the (sublane-rounded)
    # token count; always a multiple of 8 (sublane).
    tm_eff = max(8, min(_round_up(tm, 8), _round_up(tokens, 8)))
    padded = _round_up(tokens, tm_eff)

    x2d = x.reshape(tokens, H)
    if padded != tokens:
        x2d = jnp.pad(x2d, ((0, padded - tokens), (0, 0)))

    grid = (padded // tm_eff,)

    itemsize = jnp.dtype(x.dtype).itemsize
    flops = 2 * padded * H * (2 * d_ff) + 2 * padded * d_ff * H
    bytes_accessed = (
        padded * H * itemsize                                   # x in
        + padded * H * itemsize                                 # out
        + w_gu.size * jnp.dtype(w_gu.dtype).itemsize            # fused gate/up
        + w_down.size * jnp.dtype(w_down.dtype).itemsize)       # down
    cost = pl.CostEstimate(flops=flops,
                           transcendentals=padded * d_ff,
                           bytes_accessed=bytes_accessed)

    out2d = pl.pallas_call(
        functools.partial(_expert_kernel, d_ff=d_ff),
        out_shape=jax.ShapeDtypeStruct((padded, H), x.dtype),
        grid_spec=pltpu.PrefetchScalarGridSpec(
            num_scalar_prefetch=0,
            grid=grid,
            in_specs=[
                pl.BlockSpec((tm_eff, H), lambda i: (i, 0)),       # x tile
                pl.BlockSpec((H, 2 * d_ff), lambda i: (0, 0)),     # fused gate/up (resident)
                pl.BlockSpec((d_ff, H), lambda i: (0, 0)),         # down (resident)
            ],
            out_specs=pl.BlockSpec((tm_eff, H), lambda i: (i, 0)),
        ),
        compiler_params=pltpu.CompilerParams(
            dimension_semantics=("parallel",),
            vmem_limit_bytes=64 * 1024 * 1024,
        ),
        cost_estimate=cost,
    )(x2d, w_gu, w_down)

    if padded != tokens:
        out2d = out2d[:tokens]
    return out2d.reshape(B, S, H)


def _reference(x, w_gate, w_up, w_down):
    g = x @ w_gate.T
    u = x @ w_up.T
    return (jax.nn.silu(g) * u) @ w_down.T


if __name__ == "__main__":
    # Small config consistent with the module:
    #   hidden_size=32, intermediate_size=128, expert_num=4 -> d_ff = 32
    # (Real configs should keep H and d_ff multiples of 128 for lane-dense
    #  stores; the toy sizes are full-array blocks, which is also legal.)
    batch, seq, hidden = 2, 8, 32
    intermediate_size, expert_num = 128, 4
    d_ff = intermediate_size // expert_num

    key = jax.random.PRNGKey(0)
    kx, kg, ku, kd = jax.random.split(key, 4)

    x = jax.random.normal(kx, (batch, seq, hidden), dtype=jnp.float32)
    # nn.Linear weights are (out_features, in_features), no bias.
    w_gate = jax.random.normal(kg, (d_ff, hidden), dtype=jnp.float32) * 0.05
    w_up = jax.random.normal(ku, (d_ff, hidden), dtype=jnp.float32) * 0.05
    w_down = jax.random.normal(kd, (hidden, d_ff), dtype=jnp.float32) * 0.05

    # Done once at "init" time, not per forward call.
    w_gu, w_d = prepare_expert_weights(w_gate, w_up, w_down)

    out = expert_forward(x, w_gu, w_d)
    out = jax.block_until_ready(out)
    ref = _reference(x, w_gate, w_up, w_down)
    assert out.shape == (batch, seq, hidden)
    assert jnp.allclose(out, ref, atol=1e-5, rtol=1e-5), "mismatch vs reference"

    # Non-divisible token count exercises the padding path (tokens=15).
    x_odd = jax.random.normal(kx, (3, 5, hidden), dtype=jnp.float32)
    out_odd = jax.block_until_ready(expert_forward(x_odd, w_gu, w_d))
    ref_odd = _reference(x_odd, w_gate, w_up, w_down)
    assert out_odd.shape == (3, 5, hidden)
    assert jnp.allclose(out_odd, ref_odd, atol=1e-5, rtol=1e-5), "mismatch (padded path)"

    print("KERNEL_OK")
</pallas_src>

<mosaic_0001>
module attributes {stable_mosaic.version = 11 : i64} {
  func.func @_expert_kernel(%arg0: i32, %arg1: memref<16x32xf32, #tpu.memory_space<vmem>>, %arg2: memref<32x64xf32, #tpu.memory_space<vmem>>, %arg3: memref<32x32xf32, #tpu.memory_space<vmem>>, %arg4: memref<16x32xf32, #tpu.memory_space<vmem>>) attributes {dimension_semantics = [#tpu.dimension_semantics<parallel>], iteration_bounds = array<i64: 1>, scalar_prefetch = 0 : i64, scratch_operands = 0 : i64, tpu.core_type = #tpu.core_type<tc>, window_params = [{transform_indices = @transform_0, window_bounds = array<i64: 16, 32>}, {pipeline_mode = #tpu.pipeline_mode<synchronous>, transform_indices = @transform_1, window_bounds = array<i64: 32, 64>}, {pipeline_mode = #tpu.pipeline_mode<synchronous>, transform_indices = @transform_2, window_bounds = array<i64: 32, 32>}, {transform_indices = @transform_3, window_bounds = array<i64: 16, 32>}]} {
    %c0 = arith.constant 0 : index
    %c0_0 = arith.constant 0 : index
    %0 = vector.load %arg1[%c0, %c0_0] : memref<16x32xf32, #tpu.memory_space<vmem>>, vector<16x32xf32>
    %c0_1 = arith.constant 0 : index
    %c0_2 = arith.constant 0 : index
    %1 = vector.load %arg2[%c0_1, %c0_2] : memref<32x64xf32, #tpu.memory_space<vmem>>, vector<32x64xf32>
    %cst = arith.constant dense<0.000000e+00> : vector<16x64xf32>
    %2 = tpu.matmul %0, %1, %cst {dimension_numbers = #tpu.dot_dimension_numbers<[1], [0], [0], [1], [0, 0, 1, 1], [], []>} : vector<16x32xf32>, vector<32x64xf32>, vector<16x64xf32> -> vector<16x64xf32>
    %3 = vector.extract_strided_slice %2 {offsets = [0, 0], sizes = [16, 32], strides = [1, 1]} : vector<16x64xf32> to vector<16x32xf32>
    %4 = vector.extract_strided_slice %2 {offsets = [0, 32], sizes = [16, 32], strides = [1, 1]} : vector<16x64xf32> to vector<16x32xf32>
    %5 = arith.negf %3 : vector<16x32xf32>
    %6 = math.exp %5 : vector<16x32xf32>
    %cst_3 = arith.constant 1.000000e+00 : f32
    %7 = vector.broadcast %cst_3 : f32 to vector<16x32xf32>
    %8 = arith.addf %7, %6 : vector<16x32xf32>
    %9 = arith.divf %7, %8 : vector<16x32xf32>
    %10 = arith.mulf %3, %9 : vector<16x32xf32>
    %11 = arith.mulf %10, %4 : vector<16x32xf32>
    %c0_4 = arith.constant 0 : index
    %c0_5 = arith.constant 0 : index
    %12 = vector.load %arg3[%c0_4, %c0_5] : memref<32x32xf32, #tpu.memory_space<vmem>>, vector<32x32xf32>
    %cst_6 = arith.constant dense<0.000000e+00> : vector<16x32xf32>
    %13 = tpu.matmul %11, %12, %cst_6 {dimension_numbers = #tpu.dot_dimension_numbers<[1], [0], [0], [1], [0, 0, 1, 1], [], []>} : vector<16x32xf32>, vector<32x32xf32>, vector<16x32xf32> -> vector<16x32xf32>
    %c0_7 = arith.constant 0 : index
    %c0_8 = arith.constant 0 : index
    %14 = vector.load %arg4[%c0_7, %c0_8] : memref<16x32xf32, #tpu.memory_space<vmem>>, vector<16x32xf32>
    tpu.vector_store %arg4[%c0_7, %c0_8], %13 {strides = array<i32>} : memref<16x32xf32, #tpu.memory_space<vmem>>, vector<16x32xf32>,
    return
  }
  func.func @transform_0(%arg0: i32) -> (i32, i32) {
    %c0_i32 = arith.constant 0 : i32
    %c0_i32_0 = arith.constant 0 : i32
    return %arg0, %c0_i32 : i32, i32
  }
  func.func @transform_1(%arg0: i32) -> (i32, i32) {
    %c0_i32 = arith.constant 0 : i32
    %c0_i32_0 = arith.constant 0 : i32
    %c0_i32_1 = arith.constant 0 : i32
    return %c0_i32, %c0_i32_0 : i32, i32
  }
  func.func @transform_2(%arg0: i32) -> (i32, i32) {
    %c0_i32 = arith.constant 0 : i32
    %c0_i32_0 = arith.constant 0 : i32
    %c0_i32_1 = arith.constant 0 : i32
    return %c0_i32, %c0_i32_0 : i32, i32
  }
  func.func @transform_3(%arg0: i32) -> (i32, i32) {
    %c0_i32 = arith.constant 0 : i32
    %c0_i32_0 = arith.constant 0 : i32
    return %arg0, %c0_i32 : i32, i32
  }
}

</mosaic_0001>

<llo_original>
// kernel: expert_forward.1
$region0: #{expert_forward.1}
  #allocation0 [shape = 'u32[]', space=smem, size = 0x4, offset = 0x4, fixed_abs, tag = 'smem constant byte address 0x4 - core index']
  #allocation1 [shape = 'u32[72,128]{1,0:T(1,128)}', space=vmem, size = 0x9000, scoped, tag = 'internal scratch']
  %s0 = inlined_call_operand.hbm [shape: f32[16,32], index: 0, kind: input, shape index: {}]
  %s1 = inlined_call_operand.hbm [shape: f32[32,64], index: 1, kind: input, shape index: {}]
  %s2 = inlined_call_operand.hbm [shape: f32[32,32], index: 2, kind: input, shape index: {}]
  %s3 = inlined_call_operand.hbm [shape: f32[16,32], index: 3, kind: output, shape index: {}]
  %s4 = sld [smem:[#allocation0]]
  $region34: #{expert_forward.1} parent=0
    _
  %s6 = ssub.s32 1, %s4
  %s7 = scalar_select 0, %s6, %s4
  $region1: #{expert_forward.1} parent=0
    #allocation2 [shape = 'u8[8192]{0}', space=vmem, size = 0x2000, scoped, tag = 'input window, operand 0, single buffered']
    #allocation3 [shape = 's32[1]{0}', space=sflag, size = 0x4, scoped, tag = 'scoped memory for expert_forward.1']
    #allocation4 [shape = 's32[1]{0}', space=sflag, size = 0x4, scoped, tag = 'scoped memory for expert_forward.1']
    #allocation5 [shape = 'u8[16384]{0}', space=vmem, size = 0x4000, scoped, tag = 'input window, operand 1, single buffered']
    #allocation6 [shape = 's32[1]{0}', space=sflag, size = 0x4, scoped, tag = 'scoped memory for expert_forward.1']
    #allocation7 [shape = 'u8[16384]{0}', space=vmem, size = 0x4000, scoped, tag = 'input window, operand 2, single buffered']
    #allocation8 [shape = 'u8[8192]{0}', space=vmem, size = 0x2000, scoped, tag = 'output window, operand 0, single buffered']
    %8 = vsyncpa [#allocation3], 0
    %9 = vsyncpa [#allocation6], 0
    %10 = vsyncpa [#allocation4], 0
    // Predicated region
    $region2: #{expert_forward.1} parent=1 // pred_check
      _
    $region3: #{expert_forward.1} parent=1 // pred_check_branch
      %12 = sbr.rel (0) target = $region5
    $region4: #{expert_forward.1} parent=1 // pred_region
      %14 = vsyncadd [#allocation3], 0
      %s15 = sshll.u32 %s0, 4
      %s16 = int_to_ptr.hbm [resolvable:$true] %s15
      %s17 = sshll.u32 [#allocation2], 4
      %s18 = int_to_ptr.vmem [resolvable:$true] %s17
      %23 = dma.hbm_to_vmem [thread:$0]  %s16, 256, %s18, [#allocation3], 128, 128, 8
    $region5: #{expert_forward.1} parent=1 // pred_fallthru
      _
    // Predicated region
    $region6: #{expert_forward.1} parent=1 // pred_check
      _
    $region7: #{expert_forward.1} parent=1 // pred_check_branch
      %25 = sbr.rel (0) target = $region9
    $region8: #{expert_forward.1} parent=1 // pred_region
      %27 = vsyncadd [#allocation6], 0
      %s28 = sshll.u32 %s1, 4
      %s29 = int_to_ptr.hbm [resolvable:$true] %s28
      %s30 = sshll.u32 [#allocation5], 4
      %s31 = int_to_ptr.vmem [resolvable:$true] %s30
      %36 = dma.hbm_to_vmem [thread:$0]  %s29, 512, %s31, [#allocation6], 128, 128, 8
    $region9: #{expert_forward.1} parent=1 // pred_fallthru
      _
    // Predicated region
    $region10: #{expert_forward.1} parent=1 // pred_check
      _
    $region11: #{expert_forward.1} parent=1 // pred_check_branch
      %38 = sbr.rel (0) target = $region13
    $region12: #{expert_forward.1} parent=1 // pred_region
      %40 = vsyncadd [#allocation6], 0
      %s41 = sshll.u32 %s2, 4
      %s42 = int_to_ptr.hbm [resolvable:$true] %s41
      %s43 = sshll.u32 [#allocation7], 4
      %s44 = int_to_ptr.vmem [resolvable:$true] %s43
      %49 = dma.hbm_to_vmem [thread:$0]  %s42, 512, %s44, [#allocation6], 128, 128, 8
    $region13: #{expert_forward.1} parent=1 // pred_fallthru
      _
    // Predicated region
    $region14: #{expert_forward.1} parent=1 // pred_check
      _
    $region15: #{expert_forward.1} parent=1 // pred_check_branch
      %51 = sbr.rel (0) target = $region17
    $region16: #{expert_forward.1} parent=1 // pred_region
      %53 = dma.done [#allocation3], 256
    $region17: #{expert_forward.1} parent=1 // pred_fallthru
      _
    // Predicated region
    $region18: #{expert_forward.1} parent=1 // pred_check
      _
    $region19: #{expert_forward.1} parent=1 // pred_check_branch
      %55 = sbr.rel (0) target = $region21
    $region20: #{expert_forward.1} parent=1 // pred_region
      %57 = dma.done [#allocation6], 512
    $region21: #{expert_forward.1} parent=1 // pred_fallthru
      _
    // Predicated region
    $region22: #{expert_forward.1} parent=1 // pred_check
      _
    $region23: #{expert_forward.1} parent=1 // pred_check_branch
      %59 = sbr.rel (0) target = $region25
    $region24: #{expert_forward.1} parent=1 // pred_region
      %61 = dma.done [#allocation6], 512
    $region25: #{expert_forward.1} parent=1 // pred_fallthru
      _
    %v62 = vld [vmem:[#allocation2] sm:$0xff]
    %v63 = vld [vmem:[#allocation2 + $0x8] sm:$0xff]
    %v64 = vld [vmem:[#allocation5] sm:$0xff]
    %v65 = vld [vmem:[#allocation5 + $0x8] sm:$0xff]
    %v66 = vld [vmem:[#allocation5 + $0x10] sm:$0xff]
    %v67 = vld [vmem:[#allocation5 + $0x18] sm:$0xff]
    %vm68 = vcmask 261120
    %v70 = vsel %vm68, %v62, 0
    %v73 = vsel %vm68, %v63, 0
    %75 = vmatpush.msra.mxu0 0.0
    %76 = vmatpush.msra.mxu0 0.0
    %77 = vmatpush.msra.mxu0 0.0
    %78 = vmatpush.msra.mxu0 0.0
    %79 = vmatpush.msra.mxu0 0.0
    %80 = vmatpush.msra.mxu0 0.0
    %81 = vmatpush.msra.mxu0 0.0
    %82 = vmatpush.msra.mxu0 0.0
    %83 = vmatpush.msra.mxu0 0.0
    %84 = vmatpush.msra.mxu0 0.0
    %85 = vmatpush.msra.mxu0 0.0
    %86 = vmatpush.msra.mxu0 0.0
    %87 = vmatpush.msra.mxu0 %v67
    %88 = vmatpush.msra.mxu0 %v66
    %89 = vmatpush.msra.mxu0 %v65
    %90 = vmatpush.msra.mxu0 %v64
    %91 = vmatmul.f32.gmra.mxu0 %v70
    %v92 = vpop.f32.mrf.mxu0
    %v93 = vadd.f32 0.0, %v92
    %94 = vmatmul.f32.gmra.mxu0 %v73
    %v95 = vpop.f32.mrf.mxu0
    %v96 = vadd.f32 0.0, %v95
    %97 = vdwg.mxu0
    %v98 = vxor.u32 %v93, 2147483648
    %v99 = vxor.u32 %v96, 2147483648
    %v100 = vmul.f32 %v98, 1.442695
    %v101 = vpow.pop %v100
    %v102 = vmul.f32 %v99, 1.442695
    %v103 = vpow.pop %v102
    %v104 = vadd.f32 %v101, 1.0
    %v105 = vadd.f32 %v103, 1.0
    %v106 = vrcp.pop %v104
    %v107 = vmul.f32 %v104, %v106
    %v108 = vsub.f32 1.0, %v107
    %v109 = vmul.f32 %v106, %v108
    %v110 = vadd.f32 %v106, %v109
    %vm111 = vweird.f32 %v104
    %vm112 = vweird.f32 %v106
    %vm113 = vmor %vm111, %vm112
    %v114 = vsel %vm113, %v106, %v110
    %v115 = vand.u32 2147483647, %v104
    %vm116 = vcmp.eq.f32.partialorder %v115, 8.507059e+37
    %v117 = vand.u32 %v104, 2147483648
    %v118 = vor.u32 1.1754944e-38, %v117
    %v119 = vsel %vm116, %v118, %v114
    %v120 = vmul.f32 1.0, %v119
    %v121 = vrcp.pop %v105
    %v122 = vmul.f32 %v105, %v121
    %v123 = vsub.f32 1.0, %v122
    %v124 = vmul.f32 %v121, %v123
    %v125 = vadd.f32 %v121, %v124
    %vm126 = vweird.f32 %v105
    %vm127 = vweird.f32 %v121
    %vm128 = vmor %vm126, %vm127
    %v129 = vsel %vm128, %v121, %v125
    %v130 = vand.u32 2147483647, %v105
    %vm131 = vcmp.eq.f32.partialorder %v130, 8.507059e+37
    %v132 = vand.u32 %v105, 2147483648
    %v133 = vor.u32 1.1754944e-38, %v132
    %v134 = vsel %vm131, %v133, %v129
    %v135 = vmul.f32 1.0, %v134
    %v136 = vmul.f32 %v93, %v120
    %v137 = vmul.f32 %v96, %v135
    %140 = vrot.lane.b32.xlu0 %v93, 96
    %v141 = vpop.permute.xlu0 %140
    %142 = vrot.lane.b32.xlu0 %v96, 96
    %v143 = vpop.permute.xlu0 %142
    %v146 = vmul.f32 %v136, %v141
    %v147 = vmul.f32 %v137, %v143
    %v148 = vld [vmem:[#allocation7] sm:$0xff]
    %v149 = vld [vmem:[#allocation7 + $0x8] sm:$0xff]
    %v150 = vld [vmem:[#allocation7 + $0x10] sm:$0xff]
    %v151 = vld [vmem:[#allocation7 + $0x18] sm:$0xff]
    %v153 = vsel %vm68, %v146, 0
    %v156 = vsel %vm68, %v147, 0
    %158 = vmatpush.msra.mxu0 0.0
    %159 = vmatpush.msra.mxu0 0.0
    %160 = vmatpush.msra.mxu0 0.0
    %161 = vmatpush.msra.mxu0 0.0
    %162 = vmatpush.msra.mxu0 0.0
    %163 = vmatpush.msra.mxu0 0.0
    %164 = vmatpush.msra.mxu0 0.0
    %165 = vmatpush.msra.mxu0 0.0
    %166 = vmatpush.msra.mxu0 0.0
    %167 = vmatpush.msra.mxu0 0.0
    %168 = vmatpush.msra.mxu0 0.0
    %169 = vmatpush.msra.mxu0 0.0
    %170 = vmatpush.msra.mxu0 %v151
    %171 = vmatpush.msra.mxu0 %v150
    %172 = vmatpush.msra.mxu0 %v149
    %173 = vmatpush.msra.mxu0 %v148
    %174 = vmatmul.f32.gmra.mxu0 %v153
    %v175 = vpop.f32.mrf.mxu0
    %v176 = vadd.f32 0.0, %v175
    %177 = vmatmul.f32.gmra.mxu0 %v156
    %v178 = vpop.f32.mrf.mxu0
    %v179 = vadd.f32 0.0, %v178
    %180 = vdwg.mxu0
    %181 = vst.msk [vmem:[#allocation8] sm:$0xff] %vm68, %v176
    %182 = vst.msk [vmem:[#allocation8 + $0x8] sm:$0xff] %vm68, %v179
    // Predicated region
    $region26: #{expert_forward.1} parent=1 // pred_check
      _
    $region27: #{expert_forward.1} parent=1 // pred_check_branch
      %184 = sbr.rel (0) target = $region29
    $region28: #{expert_forward.1} parent=1 // pred_region
      %186 = vsyncadd [#allocation4], 0
      %s187 = sshll.u32 [#allocation8], 4
      %s188 = int_to_ptr.vmem [resolvable:$true] %s187
      %s189 = sshll.u32 %s3, 4
      %s190 = int_to_ptr.hbm [resolvable:$true] %s189
      %195 = dma.vmem_to_hbm [thread:$0]  %s188, 256, %s190, [#allocation4], 128, 128, 8
    $region29: #{expert_forward.1} parent=1 // pred_fallthru
      _
    // Predicated region
    $region30: #{expert_forward.1} parent=1 // pred_check
      _
    $region31: #{expert_forward.1} parent=1 // pred_check_branch
      %197 = sbr.rel (0) target = $region33
    $region32: #{expert_forward.1} parent=1 // pred_region
      %199 = dma.done [#allocation4], 256
    $region33: #{expert_forward.1} parent=1 // pred_fallthru
      _
    %200 = vsyncpa [#allocation3], 1
    %201 = vsyncpa [#allocation6], 1
    %202 = vsyncpa [#allocation4], 1

</llo_original>
